<compile_context>
chip_gen: v7x
topology: tpu7x:2x2x1
jax: 0.10.0
libtpu: 0.0.40
codegen_flags: <defaults>
</compile_context>

<pallas_src>
import jax
import jax.numpy as jnp
from jax.experimental import pallas as pl
from jax.experimental.pallas import tpu as pltpu

_EPS = 1e-5


def layernorm_kernel(x_ref, gamma_ref, beta_ref, o_ref):
    # x_ref: (R, D) in VMEM; gamma/beta: (1, D) in VMEM.
    x = x_ref[...].astype(jnp.float32)
    d = x.shape[-1]
    inv_d = jnp.float32(1.0 / d)

    # One pass over x for both reductions (sum and sum-of-squares).
    s1 = jnp.sum(x, axis=-1, keepdims=True)
    s2 = jnp.sum(x * x, axis=-1, keepdims=True)
    mean = s1 * inv_d
    var = s2 * inv_d - mean * mean
    inv = jax.lax.rsqrt(var + _EPS)

    g = gamma_ref[...].astype(jnp.float32)
    b = beta_ref[...].astype(jnp.float32)
    y = (x - mean) * inv * g + b
    o_ref[...] = y.astype(o_ref.dtype)


def layernorm(x, gamma, beta):
    # x: (..., D); normalize over the last dim. Operate on a 2-D
    # (rows, features) view so D stays on the lane axis.
    orig_shape = x.shape
    D = orig_shape[-1]
    x2 = x.reshape(-1, D)
    R = x2.shape[0]
    gamma2 = gamma.reshape(1, D)
    beta2 = beta.reshape(1, D)

    out = pl.pallas_call(
        layernorm_kernel,
        out_shape=jax.ShapeDtypeStruct((R, D), x.dtype),
        in_specs=[
            pl.BlockSpec(memory_space=pltpu.MemorySpace.VMEM),  # x  (R, D)
            pl.BlockSpec(memory_space=pltpu.MemorySpace.VMEM),  # gamma (1, D)
            pl.BlockSpec(memory_space=pltpu.MemorySpace.VMEM),  # beta  (1, D)
        ],
        out_specs=pl.BlockSpec(memory_space=pltpu.MemorySpace.VMEM),
    )(x2, gamma2, beta2)
    return out.reshape(orig_shape)


if __name__ == "__main__":
    key = jax.random.PRNGKey(0)
    # Shape implied by the module's forward: [1, 14, 14, 384]
    x = jax.random.normal(key, (1, 14, 14, 384), dtype=jnp.float32)

    # nn.LayerNorm default init: weight = ones, bias = zeros, shape (384,)
    gamma = jnp.ones((384,), dtype=jnp.float32)
    beta = jnp.zeros((384,), dtype=jnp.float32)

    y = layernorm(x, gamma, beta)
    jax.block_until_ready(y)

    # Sanity check against pure-JAX reference.
    mean = jnp.mean(x, axis=-1, keepdims=True)
    var = jnp.mean((x - mean) ** 2, axis=-1, keepdims=True)
    ref = (x - mean) * jax.lax.rsqrt(var + _EPS) * gamma + beta
    assert jnp.max(jnp.abs(y - ref)) < 1e-4, "mismatch vs reference"

    print("KERNEL_OK")
</pallas_src>

<mosaic_0001>
module attributes {stable_mosaic.version = 11 : i64} {
  func.func @layernorm_kernel(%arg0: memref<196x384xf32, #tpu.memory_space<vmem>>, %arg1: memref<1x384xf32, #tpu.memory_space<vmem>>, %arg2: memref<1x384xf32, #tpu.memory_space<vmem>>, %arg3: memref<196x384xf32, #tpu.memory_space<vmem>>) attributes {dimension_semantics = [], scalar_prefetch = 0 : i64, scratch_operands = 0 : i64, tpu.core_type = #tpu.core_type<tc>} {
    %c0 = arith.constant 0 : index
    %c0_0 = arith.constant 0 : index
    %0 = vector.load %arg0[%c0, %c0_0] : memref<196x384xf32, #tpu.memory_space<vmem>>, vector<196x384xf32>
    %cst = arith.constant dense<0.000000e+00> : vector<196xf32>
    %1 = vector.multi_reduction <add>, %0, %cst [1] : vector<196x384xf32> to vector<196xf32>
    %2 = vector.shape_cast %1 : vector<196xf32> to vector<196x1xf32>
    %3 = arith.mulf %0, %0 : vector<196x384xf32>
    %cst_1 = arith.constant dense<0.000000e+00> : vector<196xf32>
    %4 = vector.multi_reduction <add>, %3, %cst_1 [1] : vector<196x384xf32> to vector<196xf32>
    %5 = vector.shape_cast %4 : vector<196xf32> to vector<196x1xf32>
    %cst_2 = arith.constant 0.00260416674 : f32
    %6 = vector.broadcast %cst_2 : f32 to vector<196x1xf32>
    %7 = arith.mulf %2, %6 : vector<196x1xf32>
    %cst_3 = arith.constant 0.00260416674 : f32
    %8 = vector.broadcast %cst_3 : f32 to vector<196x1xf32>
    %9 = arith.mulf %5, %8 : vector<196x1xf32>
    %10 = arith.mulf %7, %7 : vector<196x1xf32>
    %11 = arith.subf %9, %10 : vector<196x1xf32>
    %cst_4 = arith.constant 9.99999974E-6 : f32
    %12 = vector.broadcast %cst_4 : f32 to vector<196x1xf32>
    %13 = arith.addf %11, %12 : vector<196x1xf32>
    %14 = math.rsqrt %13 : vector<196x1xf32>
    %c0_5 = arith.constant 0 : index
    %c0_6 = arith.constant 0 : index
    %15 = vector.load %arg1[%c0_5, %c0_6] : memref<1x384xf32, #tpu.memory_space<vmem>>, vector<1x384xf32>
    %c0_7 = arith.constant 0 : index
    %c0_8 = arith.constant 0 : index
    %16 = vector.load %arg2[%c0_7, %c0_8] : memref<1x384xf32, #tpu.memory_space<vmem>>, vector<1x384xf32>
    %17 = vector.broadcast %7 : vector<196x1xf32> to vector<196x384xf32>
    %18 = arith.subf %0, %17 : vector<196x384xf32>
    %19 = vector.broadcast %14 : vector<196x1xf32> to vector<196x384xf32>
    %20 = arith.mulf %18, %19 : vector<196x384xf32>
    %21 = vector.broadcast %15 : vector<1x384xf32> to vector<196x384xf32>
    %22 = arith.mulf %20, %21 : vector<196x384xf32>
    %23 = vector.broadcast %16 : vector<1x384xf32> to vector<196x384xf32>
    %24 = arith.addf %22, %23 : vector<196x384xf32>
    %c0_9 = arith.constant 0 : index
    %c0_10 = arith.constant 0 : index
    %25 = vector.load %arg3[%c0_9, %c0_10] : memref<196x384xf32, #tpu.memory_space<vmem>>, vector<196x384xf32>
    tpu.vector_store %arg3[%c0_9, %c0_10], %24 {strides = array<i32>} : memref<196x384xf32, #tpu.memory_space<vmem>>, vector<196x384xf32>,
    return
  }
}

</mosaic_0001>

<llo_original>
// kernel: tpu_custom_call.1
$region0: #{tpu_custom_call.1}
  #allocation0 [shape = 'u32[]', space=smem, size = 0x4, offset = 0x4, fixed_abs, tag = 'smem constant byte address 0x4 - core index']
  #allocation1 [shape = 'u32[144,128]{1,0:T(1,128)}', space=vmem, size = 0x12000, scoped, tag = 'internal scratch']
  %s0 = inlined_call_operand.hbm [shape: f32[196,384], index: 0, kind: input, shape index: {}]
  %s1 = inlined_call_operand.vmem [shape: f32[1,384], index: 1, kind: input, shape index: {}]
  %s2 = inlined_call_operand.vmem [shape: f32[1,384], index: 2, kind: input, shape index: {}]
  %s3 = inlined_call_operand.hbm [shape: f32[196,384], index: 3, kind: output, shape index: {}]
  %s4 = sld [smem:[#allocation0]]
  $region26: #{tpu_custom_call.1} parent=0
    _
  %s6 = ssub.s32 1, %s4
  %s7 = scalar_select 0, %s6, %s4
  $region1: #{tpu_custom_call.1} parent=0
    #allocation2 [shape = 'u8[307200]{0}', space=vmem, size = 0x4b000, scoped, tag = 'input window, operand 0, single buffered']
    #allocation3 [shape = 's32[1]{0}', space=sflag, size = 0x4, scoped, tag = 'scoped memory for tpu_custom_call.1']
    #allocation4 [shape = 's32[1]{0}', space=sflag, size = 0x4, scoped, tag = 'scoped memory for tpu_custom_call.1']
    #allocation5 [shape = 'u8[307200]{0}', space=vmem, size = 0x4b000, scoped, tag = 'output window, operand 0, single buffered']
    %8 = vsyncpa [#allocation3], 0
    %9 = vsyncpa [#allocation4], 0
    // Predicated region
    $region2: #{tpu_custom_call.1} parent=1 // pred_check
      _
    $region3: #{tpu_custom_call.1} parent=1 // pred_check_branch
      %11 = sbr.rel (0) target = $region5
    $region4: #{tpu_custom_call.1} parent=1 // pred_region
      %s13 = ssub.s32 9600, 9600
      %14 = vsyncadd [#allocation3], %s13
      %s15 = sshll.u32 [#allocation2], 4
      %s16 = int_to_ptr.vmem [resolvable:$true] %s15
      %21 = dma.hbm_to_vmem [thread:$0]  %s0, 9600, %s16, [#allocation3], 384, 384, 24
    $region5: #{tpu_custom_call.1} parent=1 // pred_fallthru
      _
    // Predicated region
    $region6: #{tpu_custom_call.1} parent=1 // pred_check
      _
    $region7: #{tpu_custom_call.1} parent=1 // pred_check_branch
      %23 = sbr.rel (0) target = $region9
    $region8: #{tpu_custom_call.1} parent=1 // pred_region
      _
    $region9: #{tpu_custom_call.1} parent=1 // pred_fallthru
      _
    // Predicated region
    $region10: #{tpu_custom_call.1} parent=1 // pred_check
      _
    $region11: #{tpu_custom_call.1} parent=1 // pred_check_branch
      %25 = sbr.rel (0) target = $region13
    $region12: #{tpu_custom_call.1} parent=1 // pred_region
      _
    $region13: #{tpu_custom_call.1} parent=1 // pred_fallthru
      _
    // Predicated region
    $region14: #{tpu_custom_call.1} parent=1 // pred_check
      _
    $region15: #{tpu_custom_call.1} parent=1 // pred_check_branch
      %27 = sbr.rel (0) target = $region17
    $region16: #{tpu_custom_call.1} parent=1 // pred_region
      %28 = dma.done [#allocation3], 9600
    $region17: #{tpu_custom_call.1} parent=1 // pred_fallthru
      _
    %v29 = vld [vmem:[#allocation2] sm:$0xff]
    %v30 = vld [vmem:[#allocation2 + $0x8] sm:$0xff]
    %v31 = vld [vmem:[#allocation2 + $0x10] sm:$0xff]
    %v32 = vld [vmem:[#allocation2 + $0x18] sm:$0xff]
    %v33 = vld [vmem:[#allocation2 + $0x20] sm:$0xff]
    %v34 = vld [vmem:[#allocation2 + $0x28] sm:$0xff]
    %v35 = vld [vmem:[#allocation2 + $0x30] sm:$0xff]
    %v36 = vld [vmem:[#allocation2 + $0x38] sm:$0xff]
    %v37 = vld [vmem:[#allocation2 + $0x40] sm:$0xff]
    %v38 = vld [vmem:[#allocation2 + $0x48] sm:$0xff]
    %v39 = vld [vmem:[#allocation2 + $0x50] sm:$0xff]
    %v40 = vld [vmem:[#allocation2 + $0x58] sm:$0xff]
    %v41 = vld [vmem:[#allocation2 + $0x60] sm:$0xff]
    %v42 = vld [vmem:[#allocation2 + $0x68] sm:$0xff]
    %v43 = vld [vmem:[#allocation2 + $0x70] sm:$0xff]
    %v44 = vld [vmem:[#allocation2 + $0x78] sm:$0xff]
    %v45 = vld [vmem:[#allocation2 + $0x80] sm:$0xff]
    %v46 = vld [vmem:[#allocation2 + $0x88] sm:$0xff]
    %v47 = vld [vmem:[#allocation2 + $0x90] sm:$0xff]
    %v48 = vld [vmem:[#allocation2 + $0x98] sm:$0xff]
    %v49 = vld [vmem:[#allocation2 + $0xa0] sm:$0xff]
    %v50 = vld [vmem:[#allocation2 + $0xa8] sm:$0xff]
    %v51 = vld [vmem:[#allocation2 + $0xb0] sm:$0xff]
    %v52 = vld [vmem:[#allocation2 + $0xb8] sm:$0xff]
    %v53 = vld [vmem:[#allocation2 + $0xc0] sm:$0xff]
    %v54 = vld [vmem:[#allocation2 + $0xc8] sm:$0xff]
    %v55 = vld [vmem:[#allocation2 + $0xd0] sm:$0xff]
    %v56 = vld [vmem:[#allocation2 + $0xd8] sm:$0xff]
    %v57 = vld [vmem:[#allocation2 + $0xe0] sm:$0xff]
    %v58 = vld [vmem:[#allocation2 + $0xe8] sm:$0xff]
    %v59 = vld [vmem:[#allocation2 + $0xf0] sm:$0xff]
    %v60 = vld [vmem:[#allocation2 + $0xf8] sm:$0xff]
    %v61 = vld [vmem:[#allocation2 + $0x100] sm:$0xff]
    %v62 = vld [vmem:[#allocation2 + $0x108] sm:$0xff]
    %v63 = vld [vmem:[#allocation2 + $0x110] sm:$0xff]
    %v64 = vld [vmem:[#allocation2 + $0x118] sm:$0xff]
    %v65 = vld [vmem:[#allocation2 + $0x120] sm:$0xff]
    %v66 = vld [vmem:[#allocation2 + $0x128] sm:$0xff]
    %v67 = vld [vmem:[#allocation2 + $0x130] sm:$0xff]
    %v68 = vld [vmem:[#allocation2 + $0x138] sm:$0xff]
    %v69 = vld [vmem:[#allocation2 + $0x140] sm:$0xff]
    %v70 = vld [vmem:[#allocation2 + $0x148] sm:$0xff]
    %v71 = vld [vmem:[#allocation2 + $0x150] sm:$0xff]
    %v72 = vld [vmem:[#allocation2 + $0x158] sm:$0xff]
    %v73 = vld [vmem:[#allocation2 + $0x160] sm:$0xff]
    %v74 = vld [vmem:[#allocation2 + $0x168] sm:$0xff]
    %v75 = vld [vmem:[#allocation2 + $0x170] sm:$0xff]
    %v76 = vld [vmem:[#allocation2 + $0x178] sm:$0xff]
    %v77 = vld [vmem:[#allocation2 + $0x180] sm:$0xff]
    %v78 = vld [vmem:[#allocation2 + $0x188] sm:$0xff]
    %v79 = vld [vmem:[#allocation2 + $0x190] sm:$0xff]
    %v80 = vld [vmem:[#allocation2 + $0x198] sm:$0xff]
    %v81 = vld [vmem:[#allocation2 + $0x1a0] sm:$0xff]
    %v82 = vld [vmem:[#allocation2 + $0x1a8] sm:$0xff]
    %v83 = vld [vmem:[#allocation2 + $0x1b0] sm:$0xff]
    %v84 = vld [vmem:[#allocation2 + $0x1b8] sm:$0xff]
    %v85 = vld [vmem:[#allocation2 + $0x1c0] sm:$0xff]
    %v86 = vld [vmem:[#allocation2 + $0x1c8] sm:$0xff]
    %v87 = vld [vmem:[#allocation2 + $0x1d0] sm:$0xff]
    %v88 = vld [vmem:[#allocation2 + $0x1d8] sm:$0xff]
    %v89 = vld [vmem:[#allocation2 + $0x1e0] sm:$0xff]
    %v90 = vld [vmem:[#allocation2 + $0x1e8] sm:$0xff]
    %v91 = vld [vmem:[#allocation2 + $0x1f0] sm:$0xff]
    %v92 = vld [vmem:[#allocation2 + $0x1f8] sm:$0xff]
    %v93 = vld [vmem:[#allocation2 + $0x200] sm:$0xff]
    %v94 = vld [vmem:[#allocation2 + $0x208] sm:$0xff]
    %v95 = vld [vmem:[#allocation2 + $0x210] sm:$0xff]
    %v96 = vld [vmem:[#allocation2 + $0x218] sm:$0xff]
    %v97 = vld [vmem:[#allocation2 + $0x220] sm:$0xff]
    %v98 = vld [vmem:[#allocation2 + $0x228] sm:$0xff]
    %v99 = vld [vmem:[#allocation2 + $0x230] sm:$0xff]
    %v100 = vld [vmem:[#allocation2 + $0x238] sm:$0xff]
    %v101 = vld [vmem:[#allocation2 + $0x240] sm:$0xf]
    %v102 = vld [vmem:[#allocation2 + $0x248] sm:$0xf]
    %v103 = vld [vmem:[#allocation2 + $0x250] sm:$0xf]
    %v104 = vadd.f32 %v29, %v30
    %v105 = vadd.f32 %v104, %v31
    %106 = vadd.xlane.f32.xlu0 %v105
    %v107 = vpop.xlane.xlu0 %106
    %v108 = vadd.f32 %v32, %v33
    %v109 = vadd.f32 %v108, %v34
    %110 = vadd.xlane.f32.xlu0 %v109
    %v111 = vpop.xlane.xlu0 %110
    %v112 = vadd.f32 %v35, %v36
    %v113 = vadd.f32 %v112, %v37
    %114 = vadd.xlane.f32.xlu0 %v113
    %v115 = vpop.xlane.xlu0 %114
    %v116 = vadd.f32 %v38, %v39
    %v117 = vadd.f32 %v116, %v40
    %118 = vadd.xlane.f32.xlu0 %v117
    %v119 = vpop.xlane.xlu0 %118
    %v120 = vadd.f32 %v41, %v42
    %v121 = vadd.f32 %v120, %v43
    %122 = vadd.xlane.f32.xlu0 %v121
    %v123 = vpop.xlane.xlu0 %122
    %v124 = vadd.f32 %v44, %v45
    %v125 = vadd.f32 %v124, %v46
    %126 = vadd.xlane.f32.xlu0 %v125
    %v127 = vpop.xlane.xlu0 %126
    %v128 = vadd.f32 %v47, %v48
    %v129 = vadd.f32 %v128, %v49
    %130 = vadd.xlane.f32.xlu0 %v129
    %v131 = vpop.xlane.xlu0 %130
    %v132 = vadd.f32 %v50, %v51
    %v133 = vadd.f32 %v132, %v52
    %134 = vadd.xlane.f32.xlu0 %v133
    %v135 = vpop.xlane.xlu0 %134
    %v136 = vadd.f32 %v53, %v54
    %v137 = vadd.f32 %v136, %v55
    %138 = vadd.xlane.f32.xlu0 %v137
    %v139 = vpop.xlane.xlu0 %138
    %v140 = vadd.f32 %v56, %v57
    %v141 = vadd.f32 %v140, %v58
    %142 = vadd.xlane.f32.xlu0 %v141
    %v143 = vpop.xlane.xlu0 %142
    %v144 = vadd.f32 %v59, %v60
    %v145 = vadd.f32 %v144, %v61
    %146 = vadd.xlane.f32.xlu0 %v145
    %v147 = vpop.xlane.xlu0 %146
    %v148 = vadd.f32 %v62, %v63
    %v149 = vadd.f32 %v148, %v64
    %150 = vadd.xlane.f32.xlu0 %v149
    %v151 = vpop.xlane.xlu0 %150
    %v152 = vadd.f32 %v65, %v66
    %v153 = vadd.f32 %v152, %v67
    %154 = vadd.xlane.f32.xlu0 %v153
    %v155 = vpop.xlane.xlu0 %154
    %v156 = vadd.f32 %v68, %v69
    %v157 = vadd.f32 %v156, %v70
    %158 = vadd.xlane.f32.xlu0 %v157
    %v159 = vpop.xlane.xlu0 %158
    %v160 = vadd.f32 %v71, %v72
    %v161 = vadd.f32 %v160, %v73
    %162 = vadd.xlane.f32.xlu0 %v161
    %v163 = vpop.xlane.xlu0 %162
    %v164 = vadd.f32 %v74, %v75
    %v165 = vadd.f32 %v164, %v76
    %166 = vadd.xlane.f32.xlu0 %v165
    %v167 = vpop.xlane.xlu0 %166
    %v168 = vadd.f32 %v77, %v78
    %v169 = vadd.f32 %v168, %v79
    %170 = vadd.xlane.f32.xlu0 %v169
    %v171 = vpop.xlane.xlu0 %170
    %v172 = vadd.f32 %v80, %v81
    %v173 = vadd.f32 %v172, %v82
    %174 = vadd.xlane.f32.xlu0 %v173
    %v175 = vpop.xlane.xlu0 %174
    %v176 = vadd.f32 %v83, %v84
    %v177 = vadd.f32 %v176, %v85
    %178 = vadd.xlane.f32.xlu0 %v177
    %v179 = vpop.xlane.xlu0 %178
    %v180 = vadd.f32 %v86, %v87
    %v181 = vadd.f32 %v180, %v88
    %182 = vadd.xlane.f32.xlu0 %v181
    %v183 = vpop.xlane.xlu0 %182
    %v184 = vadd.f32 %v89, %v90
    %v185 = vadd.f32 %v184, %v91
    %186 = vadd.xlane.f32.xlu0 %v185
    %v187 = vpop.xlane.xlu0 %186
    %v188 = vadd.f32 %v92, %v93
    %v189 = vadd.f32 %v188, %v94
    %190 = vadd.xlane.f32.xlu0 %v189
    %v191 = vpop.xlane.xlu0 %190
    %v192 = vadd.f32 %v95, %v96
    %v193 = vadd.f32 %v192, %v97
    %194 = vadd.xlane.f32.xlu0 %v193
    %v195 = vpop.xlane.xlu0 %194
    %v196 = vadd.f32 %v98, %v99
    %v197 = vadd.f32 %v196, %v100
    %198 = vadd.xlane.f32.xlu0 %v197
    %v199 = vpop.xlane.xlu0 %198
    %vm200 = vcmask 1043456
    %v201 = vsel %vm200, %v101, 0.0
    %v202 = vsel %vm200, %v102, 0.0
    %v203 = vadd.f32 %v201, %v202
    %v204 = vsel %vm200, %v103, 0.0
    %v205 = vadd.f32 %v203, %v204
    %206 = vadd.xlane.f32.xlu0 %v205
    %v207 = vpop.xlane.xlu0 %206
    %v208 = vmul.f32 %v29, %v29
    %v209 = vmul.f32 %v30, %v30
    %v210 = vmul.f32 %v31, %v31
    %v211 = vmul.f32 %v32, %v32
    %v212 = vmul.f32 %v33, %v33
    %v213 = vmul.f32 %v34, %v34
    %v214 = vmul.f32 %v35, %v35
    %v215 = vmul.f32 %v36, %v36
    %v216 = vmul.f32 %v37, %v37
    %v217 = vmul.f32 %v38, %v38
    %v218 = vmul.f32 %v39, %v39
    %v219 = vmul.f32 %v40, %v40
    %v220 = vmul.f32 %v41, %v41
    %v221 = vmul.f32 %v42, %v42
    %v222 = vmul.f32 %v43, %v43
    %v223 = vmul.f32 %v44, %v44
    %v224 = vmul.f32 %v45, %v45
    %v225 = vmul.f32 %v46, %v46
    %v226 = vmul.f32 %v47, %v47
    %v227 = vmul.f32 %v48, %v48
    %v228 = vmul.f32 %v49, %v49
    %v229 = vmul.f32 %v50, %v50
    %v230 = vmul.f32 %v51, %v51
    %v231 = vmul.f32 %v52, %v52
    %v232 = vmul.f32 %v53, %v53
    %v233 = vmul.f32 %v54, %v54
    %v234 = vmul.f32 %v55, %v55
    %v235 = vmul.f32 %v56, %v56
    %v236 = vmul.f32 %v57, %v57
    %v237 = vmul.f32 %v58, %v58
    %v238 = vmul.f32 %v59, %v59
    %v239 = vmul.f32 %v60, %v60
    %v240 = vmul.f32 %v61, %v61
    %v241 = vmul.f32 %v62, %v62
    %v242 = vmul.f32 %v63, %v63
    %v243 = vmul.f32 %v64, %v64
    %v244 = vmul.f32 %v65, %v65
    %v245 = vmul.f32 %v66, %v66
    %v246 = vmul.f32 %v67, %v67
    %v247 = vmul.f32 %v68, %v68
    %v248 = vmul.f32 %v69, %v69
    %v249 = vmul.f32 %v70, %v70
    %v250 = vmul.f32 %v71, %v71
    %v251 = vmul.f32 %v72, %v72
    %v252 = vmul.f32 %v73, %v73
    %v253 = vmul.f32 %v74, %v74
    %v254 = vmul.f32 %v75, %v75
    %v255 = vmul.f32 %v76, %v76
    %v256 = vmul.f32 %v77, %v77
    %v257 = vmul.f32 %v78, %v78
    %v258 = vmul.f32 %v79, %v79
    %v259 = vmul.f32 %v80, %v80
    %v260 = vmul.f32 %v81, %v81
    %v261 = vmul.f32 %v82, %v82
    %v262 = vmul.f32 %v83, %v83
    %v263 = vmul.f32 %v84, %v84
    %v264 = vmul.f32 %v85, %v85
    %v265 = vmul.f32 %v86, %v86
    %v266 = vmul.f32 %v87, %v87
    %v267 = vmul.f32 %v88, %v88
    %v268 = vmul.f32 %v89, %v89
    %v269 = vmul.f32 %v90, %v90
    %v270 = vmul.f32 %v91, %v91
    %v271 = vmul.f32 %v92, %v92
    %v272 = vmul.f32 %v93, %v93
    %v273 = vmul.f32 %v94, %v94
    %v274 = vmul.f32 %v95, %v95
    %v275 = vmul.f32 %v96, %v96
    %v276 = vmul.f32 %v97, %v97
    %v277 = vmul.f32 %v98, %v98
    %v278 = vmul.f32 %v99, %v99
    %v279 = vmul.f32 %v100, %v100
    %v280 = vmul.f32 %v101, %v101
    %v281 = vmul.f32 %v102, %v102
    %v282 = vmul.f32 %v103, %v103
    %v283 = vadd.f32 %v208, %v209
    %v284 = vadd.f32 %v283, %v210
    %285 = vadd.xlane.f32.xlu0 %v284
    %v286 = vpop.xlane.xlu0 %285
    %v287 = vadd.f32 %v211, %v212
    %v288 = vadd.f32 %v287, %v213
    %289 = vadd.xlane.f32.xlu0 %v288
    %v290 = vpop.xlane.xlu0 %289
    %v291 = vadd.f32 %v214, %v215
    %v292 = vadd.f32 %v291, %v216
    %293 = vadd.xlane.f32.xlu0 %v292
    %v294 = vpop.xlane.xlu0 %293
    %v295 = vadd.f32 %v217, %v218
    %v296 = vadd.f32 %v295, %v219
    %297 = vadd.xlane.f32.xlu0 %v296
    %v298 = vpop.xlane.xlu0 %297
    %v299 = vadd.f32 %v220, %v221
    %v300 = vadd.f32 %v299, %v222
    %301 = vadd.xlane.f32.xlu0 %v300
    %v302 = vpop.xlane.xlu0 %301
    %v303 = vadd.f32 %v223, %v224
    %v304 = vadd.f32 %v303, %v225
    %305 = vadd.xlane.f32.xlu0 %v304
    %v306 = vpop.xlane.xlu0 %305
    %v307 = vadd.f32 %v226, %v227
    %v308 = vadd.f32 %v307, %v228
    %309 = vadd.xlane.f32.xlu0 %v308
    %v310 = vpop.xlane.xlu0 %309
    %v311 = vadd.f32 %v229, %v230
    %v312 = vadd.f32 %v311, %v231
    %313 = vadd.xlane.f32.xlu0 %v312
    %v314 = vpop.xlane.xlu0 %313
    %v315 = vadd.f32 %v232, %v233
    %v316 = vadd.f32 %v315, %v234
    %317 = vadd.xlane.f32.xlu0 %v316
    %v318 = vpop.xlane.xlu0 %317
    %v319 = vadd.f32 %v235, %v236
    %v320 = vadd.f32 %v319, %v237
    %321 = vadd.xlane.f32.xlu0 %v320
    %v322 = vpop.xlane.xlu0 %321
    %v323 = vadd.f32 %v238, %v239
    %v324 = vadd.f32 %v323, %v240
    %325 = vadd.xlane.f32.xlu0 %v324
    %v326 = vpop.xlane.xlu0 %325
    %v327 = vadd.f32 %v241, %v242
    %v328 = vadd.f32 %v327, %v243
    %329 = vadd.xlane.f32.xlu0 %v328
    %v330 = vpop.xlane.xlu0 %329
    %v331 = vadd.f32 %v244, %v245
    %v332 = vadd.f32 %v331, %v246
    %333 = vadd.xlane.f32.xlu0 %v332
    %v334 = vpop.xlane.xlu0 %333
    %v335 = vadd.f32 %v247, %v248
    %v336 = vadd.f32 %v335, %v249
    %337 = vadd.xlane.f32.xlu0 %v336
    %v338 = vpop.xlane.xlu0 %337
    %v339 = vadd.f32 %v250, %v251
    %v340 = vadd.f32 %v339, %v252
    %341 = vadd.xlane.f32.xlu0 %v340
    %v342 = vpop.xlane.xlu0 %341
    %v343 = vadd.f32 %v253, %v254
    %v344 = vadd.f32 %v343, %v255
    %345 = vadd.xlane.f32.xlu0 %v344
    %v346 = vpop.xlane.xlu0 %345
    %v347 = vadd.f32 %v256, %v257
    %v348 = vadd.f32 %v347, %v258
    %349 = vadd.xlane.f32.xlu0 %v348
    %v350 = vpop.xlane.xlu0 %349
    %v351 = vadd.f32 %v259, %v260
    %v352 = vadd.f32 %v351, %v261
    %353 = vadd.xlane.f32.xlu0 %v352
    %v354 = vpop.xlane.xlu0 %353
    %v355 = vadd.f32 %v262, %v263
    %v356 = vadd.f32 %v355, %v264
    %357 = vadd.xlane.f32.xlu0 %v356
    %v358 = vpop.xlane.xlu0 %357
    %v359 = vadd.f32 %v265, %v266
    %v360 = vadd.f32 %v359, %v267
    %361 = vadd.xlane.f32.xlu0 %v360
    %v362 = vpop.xlane.xlu0 %361
    %v363 = vadd.f32 %v268, %v269
    %v364 = vadd.f32 %v363, %v270
    %365 = vadd.xlane.f32.xlu0 %v364
    %v366 = vpop.xlane.xlu0 %365
    %v367 = vadd.f32 %v271, %v272
    %v368 = vadd.f32 %v367, %v273
    %369 = vadd.xlane.f32.xlu0 %v368
    %v370 = vpop.xlane.xlu0 %369
    %v371 = vadd.f32 %v274, %v275
    %v372 = vadd.f32 %v371, %v276
    %373 = vadd.xlane.f32.xlu0 %v372
    %v374 = vpop.xlane.xlu0 %373
    %v375 = vadd.f32 %v277, %v278
    %v376 = vadd.f32 %v375, %v279
    %377 = vadd.xlane.f32.xlu0 %v376
    %v378 = vpop.xlane.xlu0 %377
    %v379 = vsel %vm200, %v280, 0.0
    %v380 = vsel %vm200, %v281, 0.0
    %v381 = vadd.f32 %v379, %v380
    %v382 = vsel %vm200, %v282, 0.0
    %v383 = vadd.f32 %v381, %v382
    %384 = vadd.xlane.f32.xlu0 %v383
    %v385 = vpop.xlane.xlu0 %384
    %v386 = vmul.f32 %v107, 0.0026041667
    %v387 = vmul.f32 %v111, 0.0026041667
    %v388 = vmul.f32 %v115, 0.0026041667
    %v389 = vmul.f32 %v119, 0.0026041667
    %v390 = vmul.f32 %v123, 0.0026041667
    %v391 = vmul.f32 %v127, 0.0026041667
    %v392 = vmul.f32 %v131, 0.0026041667
    %v393 = vmul.f32 %v135, 0.0026041667
    %v394 = vmul.f32 %v139, 0.0026041667
    %v395 = vmul.f32 %v143, 0.0026041667
    %v396 = vmul.f32 %v147, 0.0026041667
    %v397 = vmul.f32 %v151, 0.0026041667
    %v398 = vmul.f32 %v155, 0.0026041667
    %v399 = vmul.f32 %v159, 0.0026041667
    %v400 = vmul.f32 %v163, 0.0026041667
    %v401 = vmul.f32 %v167, 0.0026041667
    %v402 = vmul.f32 %v171, 0.0026041667
    %v403 = vmul.f32 %v175, 0.0026041667
    %v404 = vmul.f32 %v179, 0.0026041667
    %v405 = vmul.f32 %v183, 0.0026041667
    %v406 = vmul.f32 %v187, 0.0026041667
    %v407 = vmul.f32 %v191, 0.0026041667
    %v408 = vmul.f32 %v195, 0.0026041667
    %v409 = vmul.f32 %v199, 0.0026041667
    %v410 = vmul.f32 %v207, 0.0026041667
    %v411 = vmul.f32 %v286, 0.0026041667
    %v412 = vmul.f32 %v290, 0.0026041667
    %v413 = vmul.f32 %v294, 0.0026041667
    %v414 = vmul.f32 %v298, 0.0026041667
    %v415 = vmul.f32 %v302, 0.0026041667
    %v416 = vmul.f32 %v306, 0.0026041667
    %v417 = vmul.f32 %v310, 0.0026041667
    %v418 = vmul.f32 %v314, 0.0026041667
    %v419 = vmul.f32 %v318, 0.0026041667
    %v420 = vmul.f32 %v322, 0.0026041667
    %v421 = vmul.f32 %v326, 0.0026041667
    %v422 = vmul.f32 %v330, 0.0026041667
    %v423 = vmul.f32 %v334, 0.0026041667
    %v424 = vmul.f32 %v338, 0.0026041667
    %v425 = vmul.f32 %v342, 0.0026041667
    %v426 = vmul.f32 %v346, 0.0026041667
    %v427 = vmul.f32 %v350, 0.0026041667
    %v428 = vmul.f32 %v354, 0.0026041667
    %v429 = vmul.f32 %v358, 0.0026041667
    %v430 = vmul.f32 %v362, 0.0026041667
    %v431 = vmul.f32 %v366, 0.0026041667
    %v432 = vmul.f32 %v370, 0.0026041667
    %v433 = vmul.f32 %v374, 0.0026041667
    %v434 = vmul.f32 %v378, 0.0026041667
    %v435 = vmul.f32 %v385, 0.0026041667
    %v436 = vmul.f32 %v386, %v386
    %v437 = vmul.f32 %v387, %v387
    %v438 = vmul.f32 %v388, %v388
    %v439 = vmul.f32 %v389, %v389
    %v440 = vmul.f32 %v390, %v390
    %v441 = vmul.f32 %v391, %v391
    %v442 = vmul.f32 %v392, %v392
    %v443 = vmul.f32 %v393, %v393
    %v444 = vmul.f32 %v394, %v394
    %v445 = vmul.f32 %v395, %v395
    %v446 = vmul.f32 %v396, %v396
    %v447 = vmul.f32 %v397, %v397
    %v448 = vmul.f32 %v398, %v398
    %v449 = vmul.f32 %v399, %v399
    %v450 = vmul.f32 %v400, %v400
    %v451 = vmul.f32 %v401, %v401
    %v452 = vmul.f32 %v402, %v402
    %v453 = vmul.f32 %v403, %v403
    %v454 = vmul.f32 %v404, %v404
    %v455 = vmul.f32 %v405, %v405
    %v456 = vmul.f32 %v406, %v406
    %v457 = vmul.f32 %v407, %v407
    %v458 = vmul.f32 %v408, %v408
    %v459 = vmul.f32 %v409, %v409
    %v460 = vmul.f32 %v410, %v410
    %v461 = vsub.f32 %v411, %v436
    %v462 = vsub.f32 %v412, %v437
    %v463 = vsub.f32 %v413, %v438
    %v464 = vsub.f32 %v414, %v439
    %v465 = vsub.f32 %v415, %v440
    %v466 = vsub.f32 %v416, %v441
    %v467 = vsub.f32 %v417, %v442
    %v468 = vsub.f32 %v418, %v443
    %v469 = vsub.f32 %v419, %v444
    %v470 = vsub.f32 %v420, %v445
    %v471 = vsub.f32 %v421, %v446
    %v472 = vsub.f32 %v422, %v447
    %v473 = vsub.f32 %v423, %v448
    %v474 = vsub.f32 %v424, %v449
    %v475 = vsub.f32 %v425, %v450
    %v476 = vsub.f32 %v426, %v451
    %v477 = vsub.f32 %v427, %v452
    %v478 = vsub.f32 %v428, %v453
    %v479 = vsub.f32 %v429, %v454
    %v480 = vsub.f32 %v430, %v455
    %v481 = vsub.f32 %v431, %v456
    %v482 = vsub.f32 %v432, %v457
    %v483 = vsub.f32 %v433, %v458
    %v484 = vsub.f32 %v434, %v459
    %v485 = vsub.f32 %v435, %v460
    %v486 = vadd.f32 %v461, 1e-05
    %v487 = vadd.f32 %v462, 1e-05
    %v488 = vadd.f32 %v463, 1e-05
    %v489 = vadd.f32 %v464, 1e-05
    %v490 = vadd.f32 %v465, 1e-05
    %v491 = vadd.f32 %v466, 1e-05
    %v492 = vadd.f32 %v467, 1e-05
    %v493 = vadd.f32 %v468, 1e-05
    %v494 = vadd.f32 %v469, 1e-05
    %v495 = vadd.f32 %v470, 1e-05
    %v496 = vadd.f32 %v471, 1e-05
    %v497 = vadd.f32 %v472, 1e-05
    %v498 = vadd.f32 %v473, 1e-05
    %v499 = vadd.f32 %v474, 1e-05
    %v500 = vadd.f32 %v475, 1e-05
    %v501 = vadd.f32 %v476, 1e-05
    %v502 = vadd.f32 %v477, 1e-05
    %v503 = vadd.f32 %v478, 1e-05
    %v504 = vadd.f32 %v479, 1e-05
    %v505 = vadd.f32 %v480, 1e-05
    %v506 = vadd.f32 %v481, 1e-05
    %v507 = vadd.f32 %v482, 1e-05
    %v508 = vadd.f32 %v483, 1e-05
    %v509 = vadd.f32 %v484, 1e-05
    %v510 = vadd.f32 %v485, 1e-05
    %v511 = vrsqrt.pop %v486
    %v512 = vrsqrt.pop %v487
    %v513 = vrsqrt.pop %v488
    %v514 = vrsqrt.pop %v489
    %v515 = vrsqrt.pop %v490
    %v516 = vrsqrt.pop %v491
    %v517 = vrsqrt.pop %v492
    %v518 = vrsqrt.pop %v493
    %v519 = vrsqrt.pop %v494
    %v520 = vrsqrt.pop %v495
    %v521 = vrsqrt.pop %v496
    %v522 = vrsqrt.pop %v497
    %v523 = vrsqrt.pop %v498
    %v524 = vrsqrt.pop %v499
    %v525 = vrsqrt.pop %v500
    %v526 = vrsqrt.pop %v501
    %v527 = vrsqrt.pop %v502
    %v528 = vrsqrt.pop %v503
    %v529 = vrsqrt.pop %v504
    %v530 = vrsqrt.pop %v505
    %v531 = vrsqrt.pop %v506
    %v532 = vrsqrt.pop %v507
    %v533 = vrsqrt.pop %v508
    %v534 = vrsqrt.pop %v509
    %v535 = vrsqrt.pop %v510
    %v536 = vld [vmem:[%s1] sm:$0x7]
    %v537 = vld [vmem:[%s2] sm:$0x7]
    %v538 = vsub.f32 %v29, %v386
    %v539 = vsub.f32 %v30, %v386
    %v540 = vsub.f32 %v31, %v386
    %v541 = vsub.f32 %v32, %v387
    %v542 = vsub.f32 %v33, %v387
    %v543 = vsub.f32 %v34, %v387
    %v544 = vsub.f32 %v35, %v388
    %v545 = vsub.f32 %v36, %v388
    %v546 = vsub.f32 %v37, %v388
    %v547 = vsub.f32 %v38, %v389
    %v548 = vsub.f32 %v39, %v389
    %v549 = vsub.f32 %v40, %v389
    %v550 = vsub.f32 %v41, %v390
    %v551 = vsub.f32 %v42, %v390
    %v552 = vsub.f32 %v43, %v390
    %v553 = vsub.f32 %v44, %v391
    %v554 = vsub.f32 %v45, %v391
    %v555 = vsub.f32 %v46, %v391
    %v556 = vsub.f32 %v47, %v392
    %v557 = vsub.f32 %v48, %v392
    %v558 = vsub.f32 %v49, %v392
    %v559 = vsub.f32 %v50, %v393
    %v560 = vsub.f32 %v51, %v393
    %v561 = vsub.f32 %v52, %v393
    %v562 = vsub.f32 %v53, %v394
    %v563 = vsub.f32 %v54, %v394
    %v564 = vsub.f32 %v55, %v394
    %v565 = vsub.f32 %v56, %v395
    %v566 = vsub.f32 %v57, %v395
    %v567 = vsub.f32 %v58, %v395
    %v568 = vsub.f32 %v59, %v396
    %v569 = vsub.f32 %v60, %v396
    %v570 = vsub.f32 %v61, %v396
    %v571 = vsub.f32 %v62, %v397
    %v572 = vsub.f32 %v63, %v397
    %v573 = vsub.f32 %v64, %v397
    %v574 = vsub.f32 %v65, %v398
    %v575 = vsub.f32 %v66, %v398
    %v576 = vsub.f32 %v67, %v398
    %v577 = vsub.f32 %v68, %v399
    %v578 = vsub.f32 %v69, %v399
    %v579 = vsub.f32 %v70, %v399
    %v580 = vsub.f32 %v71, %v400
    %v581 = vsub.f32 %v72, %v400
    %v582 = vsub.f32 %v73, %v400
    %v583 = vsub.f32 %v74, %v401
    %v584 = vsub.f32 %v75, %v401
    %v585 = vsub.f32 %v76, %v401
    %v586 = vsub.f32 %v77, %v402
    %v587 = vsub.f32 %v78, %v402
    %v588 = vsub.f32 %v79, %v402
    %v589 = vsub.f32 %v80, %v403
    %v590 = vsub.f32 %v81, %v403
    %v591 = vsub.f32 %v82, %v403
    %v592 = vsub.f32 %v83, %v404
    %v593 = vsub.f32 %v84, %v404
    %v594 = vsub.f32 %v85, %v404
    %v595 = vsub.f32 %v86, %v405
    %v596 = vsub.f32 %v87, %v405
    %v597 = vsub.f32 %v88, %v405
    %v598 = vsub.f32 %v89, %v406
    %v599 = vsub.f32 %v90, %v406
    %v600 = vsub.f32 %v91, %v406
    %v601 = vsub.f32 %v92, %v407
    %v602 = vsub.f32 %v93, %v407
    %v603 = vsub.f32 %v94, %v407
    %v604 = vsub.f32 %v95, %v408
    %v605 = vsub.f32 %v96, %v408
    %v606 = vsub.f32 %v97, %v408
    %v607 = vsub.f32 %v98, %v409
    %v608 = vsub.f32 %v99, %v409
    %v609 = vsub.f32 %v100, %v409
    %v610 = vsub.f32 %v101, %v410
    %v611 = vsub.f32 %v102, %v410
    %v612 = vsub.f32 %v103, %v410
    %v613 = vmul.f32 %v538, %v511
    %v614 = vmul.f32 %v539, %v511
    %v615 = vmul.f32 %v540, %v511
    %v616 = vmul.f32 %v541, %v512
    %v617 = vmul.f32 %v542, %v512
    %v618 = vmul.f32 %v543, %v512
    %v619 = vmul.f32 %v544, %v513
    %v620 = vmul.f32 %v545, %v513
    %v621 = vmul.f32 %v546, %v513
    %v622 = vmul.f32 %v547, %v514
    %v623 = vmul.f32 %v548, %v514
    %v624 = vmul.f32 %v549, %v514
    %v625 = vmul.f32 %v550, %v515
    %v626 = vmul.f32 %v551, %v515
    %v627 = vmul.f32 %v552, %v515
    %v628 = vmul.f32 %v553, %v516
    %v629 = vmul.f32 %v554, %v516
    %v630 = vmul.f32 %v555, %v516
    %v631 = vmul.f32 %v556, %v517
    %v632 = vmul.f32 %v557, %v517
    %v633 = vmul.f32 %v558, %v517
    %v634 = vmul.f32 %v559, %v518
    %v635 = vmul.f32 %v560, %v518
    %v636 = vmul.f32 %v561, %v518
    %v637 = vmul.f32 %v562, %v519
    %v638 = vmul.f32 %v563, %v519
    %v639 = vmul.f32 %v564, %v519
    %v640 = vmul.f32 %v565, %v520
    %v641 = vmul.f32 %v566, %v520
    %v642 = vmul.f32 %v567, %v520
    %v643 = vmul.f32 %v568, %v521
    %v644 = vmul.f32 %v569, %v521
    %v645 = vmul.f32 %v570, %v521
    %v646 = vmul.f32 %v571, %v522
    %v647 = vmul.f32 %v572, %v522
    %v648 = vmul.f32 %v573, %v522
    %v649 = vmul.f32 %v574, %v523
    %v650 = vmul.f32 %v575, %v523
    %v651 = vmul.f32 %v576, %v523
    %v652 = vmul.f32 %v577, %v524
    %v653 = vmul.f32 %v578, %v524
    %v654 = vmul.f32 %v579, %v524
    %v655 = vmul.f32 %v580, %v525
    %v656 = vmul.f32 %v581, %v525
    %v657 = vmul.f32 %v582, %v525
    %v658 = vmul.f32 %v583, %v526
    %v659 = vmul.f32 %v584, %v526
    %v660 = vmul.f32 %v585, %v526
    %v661 = vmul.f32 %v586, %v527
    %v662 = vmul.f32 %v587, %v527
    %v663 = vmul.f32 %v588, %v527
    %v664 = vmul.f32 %v589, %v528
    %v665 = vmul.f32 %v590, %v528
    %v666 = vmul.f32 %v591, %v528
    %v667 = vmul.f32 %v592, %v529
    %v668 = vmul.f32 %v593, %v529
    %v669 = vmul.f32 %v594, %v529
    %v670 = vmul.f32 %v595, %v530
    %v671 = vmul.f32 %v596, %v530
    %v672 = vmul.f32 %v597, %v530
    %v673 = vmul.f32 %v598, %v531
    %v674 = vmul.f32 %v599, %v531
    %v675 = vmul.f32 %v600, %v531
    %v676 = vmul.f32 %v601, %v532
    %v677 = vmul.f32 %v602, %v532
    %v678 = vmul.f32 %v603, %v532
    %v679 = vmul.f32 %v604, %v533
    %v680 = vmul.f32 %v605, %v533
    %v681 = vmul.f32 %v606, %v533
    %v682 = vmul.f32 %v607, %v534
    %v683 = vmul.f32 %v608, %v534
    %v684 = vmul.f32 %v609, %v534
    %v685 = vmul.f32 %v610, %v535
    %v686 = vmul.f32 %v611, %v535
    %v687 = vmul.f32 %v612, %v535
    %v689 = vlaneseq
    %v690 = vshrl.u32 %v689, 7
    %v691 = vsub.s32 0, %v690
    %v692 = vrot.slane %v536, %v691
    %v693 = vlaneseq
    %v694 = vshrl.u32 %v693, 7
    %v695 = vsub.s32 1, %v694
    %v696 = vrot.slane %v536, %v695
    %v697 = vlaneseq
    %v698 = vshrl.u32 %v697, 7
    %v699 = vsub.s32 2, %v698
    %v700 = vrot.slane %v536, %v699
    %v704 = vmul.f32 %v613, %v692
    %v705 = vmul.f32 %v614, %v696
    %v706 = vmul.f32 %v615, %v700
    %v707 = vmul.f32 %v616, %v692
    %v708 = vmul.f32 %v617, %v696
    %v709 = vmul.f32 %v618, %v700
    %v710 = vmul.f32 %v619, %v692
    %v711 = vmul.f32 %v620, %v696
    %v712 = vmul.f32 %v621, %v700
    %v713 = vmul.f32 %v622, %v692
    %v714 = vmul.f32 %v623, %v696
    %v715 = vmul.f32 %v624, %v700
    %v716 = vmul.f32 %v625, %v692
    %v717 = vmul.f32 %v626, %v696
    %v718 = vmul.f32 %v627, %v700
    %v719 = vmul.f32 %v628, %v692
    %v720 = vmul.f32 %v629, %v696
    %v721 = vmul.f32 %v630, %v700
    %v722 = vmul.f32 %v631, %v692
    %v723 = vmul.f32 %v632, %v696
    %v724 = vmul.f32 %v633, %v700
    %v725 = vmul.f32 %v634, %v692
    %v726 = vmul.f32 %v635, %v696
    %v727 = vmul.f32 %v636, %v700
    %v728 = vmul.f32 %v637, %v692
    %v729 = vmul.f32 %v638, %v696
    %v730 = vmul.f32 %v639, %v700
    %v731 = vmul.f32 %v640, %v692
    %v732 = vmul.f32 %v641, %v696
    %v733 = vmul.f32 %v642, %v700
    %v734 = vmul.f32 %v643, %v692
    %v735 = vmul.f32 %v644, %v696
    %v736 = vmul.f32 %v645, %v700
    %v737 = vmul.f32 %v646, %v692
    %v738 = vmul.f32 %v647, %v696
    %v739 = vmul.f32 %v648, %v700
    %v740 = vmul.f32 %v649, %v692
    %v741 = vmul.f32 %v650, %v696
    %v742 = vmul.f32 %v651, %v700
    %v743 = vmul.f32 %v652, %v692
    %v744 = vmul.f32 %v653, %v696
    %v745 = vmul.f32 %v654, %v700
    %v746 = vmul.f32 %v655, %v692
    %v747 = vmul.f32 %v656, %v696
    %v748 = vmul.f32 %v657, %v700
    %v749 = vmul.f32 %v658, %v692
    %v750 = vmul.f32 %v659, %v696
    %v751 = vmul.f32 %v660, %v700
    %v752 = vmul.f32 %v661, %v692
    %v753 = vmul.f32 %v662, %v696
    %v754 = vmul.f32 %v663, %v700
    %v755 = vmul.f32 %v664, %v692
    %v756 = vmul.f32 %v665, %v696
    %v757 = vmul.f32 %v666, %v700
    %v758 = vmul.f32 %v667, %v692
    %v759 = vmul.f32 %v668, %v696
    %v760 = vmul.f32 %v669, %v700
    %v761 = vmul.f32 %v670, %v692
    %v762 = vmul.f32 %v671, %v696
    %v763 = vmul.f32 %v672, %v700
    %v764 = vmul.f32 %v673, %v692
    %v765 = vmul.f32 %v674, %v696
    %v766 = vmul.f32 %v675, %v700
    %v767 = vmul.f32 %v676, %v692
    %v768 = vmul.f32 %v677, %v696
    %v769 = vmul.f32 %v678, %v700
    %v770 = vmul.f32 %v679, %v692
    %v771 = vmul.f32 %v680, %v696
    %v772 = vmul.f32 %v681, %v700
    %v773 = vmul.f32 %v682, %v692
    %v774 = vmul.f32 %v683, %v696
    %v775 = vmul.f32 %v684, %v700
    %v776 = vmul.f32 %v685, %v692
    %v777 = vmul.f32 %v686, %v696
    %v778 = vmul.f32 %v687, %v700
    %v780 = vlaneseq
    %v781 = vshrl.u32 %v780, 7
    %v782 = vsub.s32 0, %v781
    %v783 = vrot.slane %v537, %v782
    %v784 = vlaneseq
    %v785 = vshrl.u32 %v784, 7
    %v786 = vsub.s32 1, %v785
    %v787 = vrot.slane %v537, %v786
    %v788 = vlaneseq
    %v789 = vshrl.u32 %v788, 7
    %v790 = vsub.s32 2, %v789
    %v791 = vrot.slane %v537, %v790
    %v795 = vadd.f32 %v704, %v783
    %v796 = vadd.f32 %v705, %v787
    %v797 = vadd.f32 %v706, %v791
    %v798 = vadd.f32 %v707, %v783
    %v799 = vadd.f32 %v708, %v787
    %v800 = vadd.f32 %v709, %v791
    %v801 = vadd.f32 %v710, %v783
    %v802 = vadd.f32 %v711, %v787
    %v803 = vadd.f32 %v712, %v791
    %v804 = vadd.f32 %v713, %v783
    %v805 = vadd.f32 %v714, %v787
    %v806 = vadd.f32 %v715, %v791
    %v807 = vadd.f32 %v716, %v783
    %v808 = vadd.f32 %v717, %v787
    %v809 = vadd.f32 %v718, %v791
    %v810 = vadd.f32 %v719, %v783
    %v811 = vadd.f32 %v720, %v787
    %v812 = vadd.f32 %v721, %v791
    %v813 = vadd.f32 %v722, %v783
    %v814 = vadd.f32 %v723, %v787
    %v815 = vadd.f32 %v724, %v791
    %v816 = vadd.f32 %v725, %v783
    %v817 = vadd.f32 %v726, %v787
    %v818 = vadd.f32 %v727, %v791
    %v819 = vadd.f32 %v728, %v783
    %v820 = vadd.f32 %v729, %v787
    %v821 = vadd.f32 %v730, %v791
    %v822 = vadd.f32 %v731, %v783
    %v823 = vadd.f32 %v732, %v787
    %v824 = vadd.f32 %v733, %v791
    %v825 = vadd.f32 %v734, %v783
    %v826 = vadd.f32 %v735, %v787
    %v827 = vadd.f32 %v736, %v791
    %v828 = vadd.f32 %v737, %v783
    %v829 = vadd.f32 %v738, %v787
    %v830 = vadd.f32 %v739, %v791
    %v831 = vadd.f32 %v740, %v783
    %v832 = vadd.f32 %v741, %v787
    %v833 = vadd.f32 %v742, %v791
    %v834 = vadd.f32 %v743, %v783
    %v835 = vadd.f32 %v744, %v787
    %v836 = vadd.f32 %v745, %v791
    %v837 = vadd.f32 %v746, %v783
    %v838 = vadd.f32 %v747, %v787
    %v839 = vadd.f32 %v748, %v791
    %v840 = vadd.f32 %v749, %v783
    %v841 = vadd.f32 %v750, %v787
    %v842 = vadd.f32 %v751, %v791
    %v843 = vadd.f32 %v752, %v783
    %v844 = vadd.f32 %v753, %v787
    %v845 = vadd.f32 %v754, %v791
    %v846 = vadd.f32 %v755, %v783
    %v847 = vadd.f32 %v756, %v787
    %v848 = vadd.f32 %v757, %v791
    %v849 = vadd.f32 %v758, %v783
    %v850 = vadd.f32 %v759, %v787
    %v851 = vadd.f32 %v760, %v791
    %v852 = vadd.f32 %v761, %v783
    %v853 = vadd.f32 %v762, %v787
    %v854 = vadd.f32 %v763, %v791
    %v855 = vadd.f32 %v764, %v783
    %v856 = vadd.f32 %v765, %v787
    %v857 = vadd.f32 %v766, %v791
    %v858 = vadd.f32 %v767, %v783
    %v859 = vadd.f32 %v768, %v787
    %v860 = vadd.f32 %v769, %v791
    %v861 = vadd.f32 %v770, %v783
    %v862 = vadd.f32 %v771, %v787
    %v863 = vadd.f32 %v772, %v791
    %v864 = vadd.f32 %v773, %v783
    %v865 = vadd.f32 %v774, %v787
    %v866 = vadd.f32 %v775, %v791
    %v867 = vadd.f32 %v776, %v783
    %v868 = vadd.f32 %v777, %v787
    %v869 = vadd.f32 %v778, %v791
    %870 = vst [vmem:[#allocation5] sm:$0xff] %v795
    %871 = vst [vmem:[#allocation5 + $0x8] sm:$0xff] %v796
    %872 = vst [vmem:[#allocation5 + $0x10] sm:$0xff] %v797
    %873 = vst [vmem:[#allocation5 + $0x18] sm:$0xff] %v798
    %874 = vst [vmem:[#allocation5 + $0x20] sm:$0xff] %v799
    %875 = vst [vmem:[#allocation5 + $0x28] sm:$0xff] %v800
    %876 = vst [vmem:[#allocation5 + $0x30] sm:$0xff] %v801
    %877 = vst [vmem:[#allocation5 + $0x38] sm:$0xff] %v802
    %878 = vst [vmem:[#allocation5 + $0x40] sm:$0xff] %v803
    %879 = vst [vmem:[#allocation5 + $0x48] sm:$0xff] %v804
    %880 = vst [vmem:[#allocation5 + $0x50] sm:$0xff] %v805
    %881 = vst [vmem:[#allocation5 + $0x58] sm:$0xff] %v806
    %882 = vst [vmem:[#allocation5 + $0x60] sm:$0xff] %v807
    %883 = vst [vmem:[#allocation5 + $0x68] sm:$0xff] %v808
    %884 = vst [vmem:[#allocation5 + $0x70] sm:$0xff] %v809
    %885 = vst [vmem:[#allocation5 + $0x78] sm:$0xff] %v810
    %886 = vst [vmem:[#allocation5 + $0x80] sm:$0xff] %v811
    %887 = vst [vmem:[#allocation5 + $0x88] sm:$0xff] %v812
    %888 = vst [vmem:[#allocation5 + $0x90] sm:$0xff] %v813
    %889 = vst [vmem:[#allocation5 + $0x98] sm:$0xff] %v814
    %890 = vst [vmem:[#allocation5 + $0xa0] sm:$0xff] %v815
    %891 = vst [vmem:[#allocation5 + $0xa8] sm:$0xff] %v816
    %892 = vst [vmem:[#allocation5 + $0xb0] sm:$0xff] %v817
    %893 = vst [vmem:[#allocation5 + $0xb8] sm:$0xff] %v818
    %894 = vst [vmem:[#allocation5 + $0xc0] sm:$0xff] %v819
    %895 = vst [vmem:[#allocation5 + $0xc8] sm:$0xff] %v820
    %896 = vst [vmem:[#allocation5 + $0xd0] sm:$0xff] %v821
    %897 = vst [vmem:[#allocation5 + $0xd8] sm:$0xff] %v822
    %898 = vst [vmem:[#allocation5 + $0xe0] sm:$0xff] %v823
    %899 = vst [vmem:[#allocation5 + $0xe8] sm:$0xff] %v824
    %900 = vst [vmem:[#allocation5 + $0xf0] sm:$0xff] %v825
    %901 = vst [vmem:[#allocation5 + $0xf8] sm:$0xff] %v826
    %902 = vst [vmem:[#allocation5 + $0x100] sm:$0xff] %v827
    %903 = vst [vmem:[#allocation5 + $0x108] sm:$0xff] %v828
    %904 = vst [vmem:[#allocation5 + $0x110] sm:$0xff] %v829
    %905 = vst [vmem:[#allocation5 + $0x118] sm:$0xff] %v830
    %906 = vst [vmem:[#allocation5 + $0x120] sm:$0xff] %v831
    %907 = vst [vmem:[#allocation5 + $0x128] sm:$0xff] %v832
    %908 = vst [vmem:[#allocation5 + $0x130] sm:$0xff] %v833
    %909 = vst [vmem:[#allocation5 + $0x138] sm:$0xff] %v834
    %910 = vst [vmem:[#allocation5 + $0x140] sm:$0xff] %v835
    %911 = vst [vmem:[#allocation5 + $0x148] sm:$0xff] %v836
    %912 = vst [vmem:[#allocation5 + $0x150] sm:$0xff] %v837
    %913 = vst [vmem:[#allocation5 + $0x158] sm:$0xff] %v838
    %914 = vst [vmem:[#allocation5 + $0x160] sm:$0xff] %v839
    %915 = vst [vmem:[#allocation5 + $0x168] sm:$0xff] %v840
    %916 = vst [vmem:[#allocation5 + $0x170] sm:$0xff] %v841
    %917 = vst [vmem:[#allocation5 + $0x178] sm:$0xff] %v842
    %918 = vst [vmem:[#allocation5 + $0x180] sm:$0xff] %v843
    %919 = vst [vmem:[#allocation5 + $0x188] sm:$0xff] %v844
    %920 = vst [vmem:[#allocation5 + $0x190] sm:$0xff] %v845
    %921 = vst [vmem:[#allocation5 + $0x198] sm:$0xff] %v846
    %922 = vst [vmem:[#allocation5 + $0x1a0] sm:$0xff] %v847
    %923 = vst [vmem:[#allocation5 + $0x1a8] sm:$0xff] %v848
    %924 = vst [vmem:[#allocation5 + $0x1b0] sm:$0xff] %v849
    %925 = vst [vmem:[#allocation5 + $0x1b8] sm:$0xff] %v850
    %926 = vst [vmem:[#allocation5 + $0x1c0] sm:$0xff] %v851
    %927 = vst [vmem:[#allocation5 + $0x1c8] sm:$0xff] %v852
    %928 = vst [vmem:[#allocation5 + $0x1d0] sm:$0xff] %v853
    %929 = vst [vmem:[#allocation5 + $0x1d8] sm:$0xff] %v854
    %930 = vst [vmem:[#allocation5 + $0x1e0] sm:$0xff] %v855
    %931 = vst [vmem:[#allocation5 + $0x1e8] sm:$0xff] %v856
    %932 = vst [vmem:[#allocation5 + $0x1f0] sm:$0xff] %v857
    %933 = vst [vmem:[#allocation5 + $0x1f8] sm:$0xff] %v858
    %934 = vst [vmem:[#allocation5 + $0x200] sm:$0xff] %v859
    %935 = vst [vmem:[#allocation5 + $0x208] sm:$0xff] %v860
    %936 = vst [vmem:[#allocation5 + $0x210] sm:$0xff] %v861
    %937 = vst [vmem:[#allocation5 + $0x218] sm:$0xff] %v862
    %938 = vst [vmem:[#allocation5 + $0x220] sm:$0xff] %v863
    %939 = vst [vmem:[#allocation5 + $0x228] sm:$0xff] %v864
    %940 = vst [vmem:[#allocation5 + $0x230] sm:$0xff] %v865
    %941 = vst [vmem:[#allocation5 + $0x238] sm:$0xff] %v866
    %942 = vst [vmem:[#allocation5 + $0x240] sm:$0xf] %v867
    %943 = vst [vmem:[#allocation5 + $0x248] sm:$0xf] %v868
    %944 = vst [vmem:[#allocation5 + $0x250] sm:$0xf] %v869
    // Predicated region
    $region18: #{tpu_custom_call.1} parent=1 // pred_check
      _
    $region19: #{tpu_custom_call.1} parent=1 // pred_check_branch
      %946 = sbr.rel (0) target = $region21
    $region20: #{tpu_custom_call.1} parent=1 // pred_region
      %s948 = ssub.s32 9600, 9600
      %949 = vsyncadd [#allocation4], %s948
      %s950 = sshll.u32 [#allocation5], 4
      %s951 = int_to_ptr.vmem [resolvable:$true] %s950
      %956 = dma.vmem_to_hbm [thread:$0]  %s951, 9600, %s3, [#allocation4], 384, 384, 24
    $region21: #{tpu_custom_call.1} parent=1 // pred_fallthru
      _
    // Predicated region
    $region22: #{tpu_custom_call.1} parent=1 // pred_check
      _
    $region23: #{tpu_custom_call.1} parent=1 // pred_check_branch
      %958 = sbr.rel (0) target = $region25
    $region24: #{tpu_custom_call.1} parent=1 // pred_region
      %959 = dma.done [#allocation4], 9600
    $region25: #{tpu_custom_call.1} parent=1 // pred_fallthru
      _
    %960 = vsyncpa [#allocation3], 1
    %961 = vsyncpa [#allocation4], 1

</llo_original>
